<compile_context>
chip_gen: v7x
topology: tpu7x:2x2x1
jax: 0.10.0
libtpu: 0.0.40
codegen_flags: <defaults>
</compile_context>

<pallas_src>
import functools
import numpy as np
import jax
import jax.numpy as jnp
from jax.experimental import pallas as pl
from jax.experimental.pallas import tpu as pltpu

EPS = 1e-6
DROPOUT_P = 0.1
_VMEM_LIMIT = 64 << 20     # scoped-VMEM ceiling (never above v7x physical 64 MiB)
_TILE_BUDGET = 40 << 20    # what we let the double-buffered blocks consume


def _pick_tm(M, H, n_big_arrays):
    """Largest row tile (multiple of 32, <=1024) whose double-buffered f32
    blocks for all big streamed arrays fit the VMEM tile budget."""
    tm = _TILE_BUDGET // (n_big_arrays * 2 * H * 4)
    tm = int(max(32, min(1024, (tm // 32) * 32)))
    return M if M <= tm else tm   # small inputs: one full-extent block


def _dropout_threshold(p):
    # keep an element iff its uint32 random bits >= threshold  (P(drop) = p)
    return min((1 << 32) - 1, int(round(p * float(1 << 32))))


# ---------------------------------------------------------------------------
# Kernel 1: LayerNorm with torch semantics of the reference module:
#   mean over last dim; std is UNBIASED (divide by N-1); eps added to std.
# ---------------------------------------------------------------------------
def _layernorm_kernel(x_ref, gamma_ref, beta_ref, o_ref):
    x = x_ref[...].astype(jnp.float32)                       # (tm, H)
    h = x.shape[-1]
    mean = jnp.mean(x, axis=-1, keepdims=True)
    diff = x - mean
    var_unbiased = jnp.sum(diff * diff, axis=-1, keepdims=True) * (1.0 / (h - 1))
    # One divide per ROW ((tm,1)) then a broadcast multiply, instead of a
    # full-width (tm,H) divide.
    inv = 1.0 / (jnp.sqrt(var_unbiased) + EPS)
    o_ref[...] = (gamma_ref[...] * (diff * inv) + beta_ref[...]).astype(o_ref.dtype)


def layernorm(x2d, gamma, beta, *, tm=None):
    M, H = x2d.shape
    if tm is None:
        tm = _pick_tm(M, H, n_big_arrays=2)        # x and out are the big streams
    grid = (pl.cdiv(M, tm),)                       # ragged last block: OOB rows
    return pl.pallas_call(                         # are padded / writes dropped
        _layernorm_kernel,
        out_shape=jax.ShapeDtypeStruct((M, H), x2d.dtype),
        grid_spec=pltpu.PrefetchScalarGridSpec(
            num_scalar_prefetch=0,
            grid=grid,
            in_specs=[
                pl.BlockSpec((tm, H), lambda i: (i, 0)),
                pl.BlockSpec((1, H), lambda i: (0, 0)),
                pl.BlockSpec((1, H), lambda i: (0, 0)),
            ],
            out_specs=pl.BlockSpec((tm, H), lambda i: (i, 0)),
        ),
        compiler_params=pltpu.CompilerParams(
            dimension_semantics=("parallel",),
            vmem_limit_bytes=_VMEM_LIMIT,
        ),
    )(x2d, gamma.reshape(1, H), beta.reshape(1, H))


# ---------------------------------------------------------------------------
# Kernel 2: residual add + (inverted) dropout:  out = x + dropout(s)
# Dropout keep-mask is a pure integer threshold test on precomputed uint32
# random bits (no float convert / mask / scale chain on the VPU).
# ---------------------------------------------------------------------------
def _residual_dropout_kernel(x_ref, s_ref, bits_ref, o_ref, *, threshold, inv_keep):
    x = x_ref[...].astype(jnp.float32)
    s = s_ref[...].astype(jnp.float32)
    keep = bits_ref[...] >= jnp.uint32(threshold)
    s = jnp.where(keep, s * inv_keep, 0.0)
    o_ref[...] = (x + s).astype(o_ref.dtype)


def _residual_kernel(x_ref, s_ref, o_ref):
    o_ref[...] = (x_ref[...].astype(jnp.float32)
                  + s_ref[...].astype(jnp.float32)).astype(o_ref.dtype)


def residual_dropout(x2d, s2d, bits=None, *, p=DROPOUT_P, apply_dropout, tm=None):
    M, H = x2d.shape
    apply_dropout = bool(apply_dropout) and p > 0.0 and bits is not None
    n_big = 4 if apply_dropout else 3              # (x, s, [bits], out)
    if tm is None:
        tm = _pick_tm(M, H, n_big_arrays=n_big)
    grid = (pl.cdiv(M, tm),)
    row_spec = pl.BlockSpec((tm, H), lambda i: (i, 0))
    cp = pltpu.CompilerParams(
        dimension_semantics=("parallel",),
        vmem_limit_bytes=_VMEM_LIMIT,
    )
    if apply_dropout:
        kernel = functools.partial(
            _residual_dropout_kernel,
            threshold=_dropout_threshold(p),
            inv_keep=float(1.0 / (1.0 - p)),
        )
        return pl.pallas_call(
            kernel,
            out_shape=jax.ShapeDtypeStruct((M, H), x2d.dtype),
            grid_spec=pltpu.PrefetchScalarGridSpec(
                num_scalar_prefetch=0,
                grid=grid,
                in_specs=[row_spec, row_spec, row_spec],
                out_specs=row_spec,
            ),
            compiler_params=cp,
        )(x2d, s2d, bits)
    return pl.pallas_call(
        _residual_kernel,
        out_shape=jax.ShapeDtypeStruct((M, H), x2d.dtype),
        grid_spec=pltpu.PrefetchScalarGridSpec(
            num_scalar_prefetch=0,
            grid=grid,
            in_specs=[row_spec, row_spec],
            out_specs=row_spec,
        ),
        compiler_params=cp,
    )(x2d, s2d)


# ---------------------------------------------------------------------------
# SublayerConnection module (JAX/Pallas)
# ---------------------------------------------------------------------------
class SublayerConnection:
    def __init__(self, size, dropout=DROPOUT_P):
        self.size = size
        self.dropout = dropout
        # Deterministic init, matching nn.Parameter(torch.ones/zeros(features))
        self.a2 = jnp.ones((size,), jnp.float32)
        self.b2 = jnp.zeros((size,), jnp.float32)

    def __call__(self, x, sublayer, *, training=True, rng_key=None):
        B, S, H = x.shape
        x2d = x.reshape(B * S, H)
        normed = layernorm(x2d, self.a2, self.b2)
        # TODO(synk): if `sublayer` were a known matmul, residual+dropout could
        # be fused into its epilogue to save one M*H HBM round-trip; it is an
        # opaque callable here, so it stays a separate pass.
        sub_out = sublayer(normed.reshape(B, S, H)).reshape(B * S, H)
        apply_dropout = training and self.dropout > 0.0
        bits = None
        if apply_dropout:
            if rng_key is None:
                rng_key = jax.random.PRNGKey(0)
            # TODO(synk): on real TPU hardware the bits could be drawn in-kernel
            # with pltpu.prng_seed/prng_random_bits (saves one M*H*4B stream),
            # but those primitives have no CPU/interpret lowering, so the bits
            # are generated with jax.random and streamed into the kernel.
            bits = jax.random.bits(rng_key, (B * S, H), dtype=jnp.uint32)
        out = residual_dropout(
            x2d, sub_out, bits,
            p=self.dropout, apply_dropout=apply_dropout,
        )
        return out.reshape(B, S, H)


# ---------------------------------------------------------------------------
# Pure-JAX reference for correctness checks.
# ---------------------------------------------------------------------------
def _ref_layernorm(x, a2, b2):
    mean = x.mean(-1, keepdims=True)
    diff = x - mean
    std = jnp.sqrt(jnp.sum(diff * diff, -1, keepdims=True) / (x.shape[-1] - 1))
    return a2 * diff / (std + EPS) + b2


if __name__ == "__main__":
    B, S, H = 2, 8, 128
    key = jax.random.PRNGKey(0)
    kx, kw = jax.random.split(key)
    x = jax.random.normal(kx, (B, S, H), dtype=jnp.float32)

    # Example sublayer passed to forward(): a deterministic linear + tanh.
    W = jax.random.normal(kw, (H, H), dtype=jnp.float32) / np.sqrt(H)
    sublayer = lambda y: jnp.tanh(y @ W)

    mod = SublayerConnection(H, dropout=DROPOUT_P)

    # Eval mode (dropout = identity): check against pure-JAX reference.
    out_eval = mod(x, sublayer, training=False)
    jax.block_until_ready(out_eval)
    ref_eval = x + sublayer(_ref_layernorm(x, mod.a2, mod.b2))
    np.testing.assert_allclose(np.asarray(out_eval), np.asarray(ref_eval),
                               atol=1e-4, rtol=1e-4)

    # Train mode: rebuild the exact keep-mask from the same key and compare.
    key_drop = jax.random.PRNGKey(7)
    out_train = mod(x, sublayer, training=True, rng_key=key_drop)
    jax.block_until_ready(out_train)
    bits = jax.random.bits(key_drop, (B * S, H), dtype=jnp.uint32).reshape(B, S, H)
    keep = bits >= jnp.uint32(_dropout_threshold(DROPOUT_P))
    s_ref = sublayer(_ref_layernorm(x, mod.a2, mod.b2))
    ref_train = x + jnp.where(keep, s_ref * (1.0 / (1.0 - DROPOUT_P)), 0.0)
    np.testing.assert_allclose(np.asarray(out_train), np.asarray(ref_train),
                               atol=1e-4, rtol=1e-4)
    assert out_train.shape == x.shape and out_train.dtype == x.dtype

    print("KERNEL_OK")
</pallas_src>

<mosaic_0001>
module attributes {stable_mosaic.version = 11 : i64} {
  func.func @_layernorm_kernel(%arg0: i32, %arg1: memref<16x128xf32, #tpu.memory_space<vmem>>, %arg2: memref<1x128xf32, #tpu.memory_space<vmem>>, %arg3: memref<1x128xf32, #tpu.memory_space<vmem>>, %arg4: memref<16x128xf32, #tpu.memory_space<vmem>>) attributes {dimension_semantics = [#tpu.dimension_semantics<parallel>], iteration_bounds = array<i64: 1>, scalar_prefetch = 0 : i64, scratch_operands = 0 : i64, tpu.core_type = #tpu.core_type<tc>, window_params = [{transform_indices = @transform_0, window_bounds = array<i64: 16, 128>}, {pipeline_mode = #tpu.pipeline_mode<synchronous>, transform_indices = @transform_1, window_bounds = array<i64: 1, 128>}, {pipeline_mode = #tpu.pipeline_mode<synchronous>, transform_indices = @transform_2, window_bounds = array<i64: 1, 128>}, {transform_indices = @transform_3, window_bounds = array<i64: 16, 128>}]} {
    %c0 = arith.constant 0 : index
    %c0_0 = arith.constant 0 : index
    %0 = vector.load %arg1[%c0, %c0_0] : memref<16x128xf32, #tpu.memory_space<vmem>>, vector<16x128xf32>
    %cst = arith.constant dense<0.000000e+00> : vector<16xf32>
    %1 = vector.multi_reduction <add>, %0, %cst [1] : vector<16x128xf32> to vector<16xf32>
    %2 = vector.shape_cast %1 : vector<16xf32> to vector<16x1xf32>
    %cst_1 = arith.constant 1.280000e+02 : f32
    %3 = vector.broadcast %cst_1 : f32 to vector<16x1xf32>
    %4 = arith.divf %2, %3 : vector<16x1xf32>
    %5 = vector.broadcast %4 : vector<16x1xf32> to vector<16x128xf32>
    %6 = arith.subf %0, %5 : vector<16x128xf32>
    %7 = arith.mulf %6, %6 : vector<16x128xf32>
    %cst_2 = arith.constant dense<0.000000e+00> : vector<16xf32>
    %8 = vector.multi_reduction <add>, %7, %cst_2 [1] : vector<16x128xf32> to vector<16xf32>
    %9 = vector.shape_cast %8 : vector<16xf32> to vector<16x1xf32>
    %cst_3 = arith.constant 0.00787401571 : f32
    %10 = vector.broadcast %cst_3 : f32 to vector<16x1xf32>
    %11 = arith.mulf %9, %10 : vector<16x1xf32>
    %12 = math.sqrt %11 : vector<16x1xf32>
    %cst_4 = arith.constant 9.99999997E-7 : f32
    %13 = vector.broadcast %cst_4 : f32 to vector<16x1xf32>
    %14 = arith.addf %12, %13 : vector<16x1xf32>
    %cst_5 = arith.constant 1.000000e+00 : f32
    %15 = vector.broadcast %cst_5 : f32 to vector<16x1xf32>
    %16 = arith.divf %15, %14 : vector<16x1xf32>
    %c0_6 = arith.constant 0 : index
    %c0_7 = arith.constant 0 : index
    %17 = vector.load %arg2[%c0_6, %c0_7] : memref<1x128xf32, #tpu.memory_space<vmem>>, vector<1x128xf32>
    %18 = vector.broadcast %16 : vector<16x1xf32> to vector<16x128xf32>
    %19 = arith.mulf %6, %18 : vector<16x128xf32>
    %20 = vector.broadcast %17 : vector<1x128xf32> to vector<16x128xf32>
    %21 = arith.mulf %20, %19 : vector<16x128xf32>
    %c0_8 = arith.constant 0 : index
    %c0_9 = arith.constant 0 : index
    %22 = vector.load %arg3[%c0_8, %c0_9] : memref<1x128xf32, #tpu.memory_space<vmem>>, vector<1x128xf32>
    %23 = vector.broadcast %22 : vector<1x128xf32> to vector<16x128xf32>
    %24 = arith.addf %21, %23 : vector<16x128xf32>
    %c0_10 = arith.constant 0 : index
    %c0_11 = arith.constant 0 : index
    %25 = vector.load %arg4[%c0_10, %c0_11] : memref<16x128xf32, #tpu.memory_space<vmem>>, vector<16x128xf32>
    tpu.vector_store %arg4[%c0_10, %c0_11], %24 {strides = array<i32>} : memref<16x128xf32, #tpu.memory_space<vmem>>, vector<16x128xf32>,
    return
  }
  func.func @transform_0(%arg0: i32) -> (i32, i32) {
    %c0_i32 = arith.constant 0 : i32
    %c0_i32_0 = arith.constant 0 : i32
    return %arg0, %c0_i32 : i32, i32
  }
  func.func @transform_1(%arg0: i32) -> (i32, i32) {
    %c0_i32 = arith.constant 0 : i32
    %c0_i32_0 = arith.constant 0 : i32
    %c0_i32_1 = arith.constant 0 : i32
    return %c0_i32, %c0_i32_0 : i32, i32
  }
  func.func @transform_2(%arg0: i32) -> (i32, i32) {
    %c0_i32 = arith.constant 0 : i32
    %c0_i32_0 = arith.constant 0 : i32
    %c0_i32_1 = arith.constant 0 : i32
    return %c0_i32, %c0_i32_0 : i32, i32
  }
  func.func @transform_3(%arg0: i32) -> (i32, i32) {
    %c0_i32 = arith.constant 0 : i32
    %c0_i32_0 = arith.constant 0 : i32
    return %arg0, %c0_i32 : i32, i32
  }
}

</mosaic_0001>

<llo_original>
// kernel: tpu_custom_call.1
$region0: #{tpu_custom_call.1}
  #allocation0 [shape = 'u32[]', space=smem, size = 0x4, offset = 0x4, fixed_abs, tag = 'smem constant byte address 0x4 - core index']
  #allocation1 [shape = 'u32[144,128]{1,0:T(1,128)}', space=vmem, size = 0x12000, scoped, tag = 'internal scratch']
  %s0 = inlined_call_operand.hbm [shape: f32[16,128], index: 0, kind: input, shape index: {}]
  %s1 = inlined_call_operand.hbm [shape: f32[1,128], index: 1, kind: input, shape index: {}]
  %s2 = inlined_call_operand.hbm [shape: f32[1,128], index: 2, kind: input, shape index: {}]
  %s3 = inlined_call_operand.hbm [shape: f32[16,128], index: 3, kind: output, shape index: {}]
  %s4 = sld [smem:[#allocation0]]
  $region34: #{tpu_custom_call.1} parent=0
    _
  %s6 = ssub.s32 1, %s4
  %s7 = scalar_select 0, %s6, %s4
  $region1: #{tpu_custom_call.1} parent=0
    #allocation2 [shape = 'u8[8192]{0}', space=vmem, size = 0x2000, scoped, tag = 'input window, operand 0, single buffered']
    #allocation3 [shape = 's32[1]{0}', space=sflag, size = 0x4, scoped, tag = 'scoped memory for tpu_custom_call.1']
    #allocation4 [shape = 's32[1]{0}', space=sflag, size = 0x4, scoped, tag = 'scoped memory for tpu_custom_call.1']
    #allocation5 [shape = 'u8[512]{0}', space=vmem, size = 0x400, scoped, tag = 'input window, operand 1, single buffered']
    #allocation6 [shape = 's32[1]{0}', space=sflag, size = 0x4, scoped, tag = 'scoped memory for tpu_custom_call.1']
    #allocation7 [shape = 'u8[512]{0}', space=vmem, size = 0x400, scoped, tag = 'input window, operand 2, single buffered']
    #allocation8 [shape = 'u8[8192]{0}', space=vmem, size = 0x2000, scoped, tag = 'output window, operand 0, single buffered']
    %8 = vsyncpa [#allocation3], 0
    %9 = vsyncpa [#allocation6], 0
    %10 = vsyncpa [#allocation4], 0
    // Predicated region
    $region2: #{tpu_custom_call.1} parent=1 // pred_check
      _
    $region3: #{tpu_custom_call.1} parent=1 // pred_check_branch
      %12 = sbr.rel (0) target = $region5
    $region4: #{tpu_custom_call.1} parent=1 // pred_region
      %s14 = ssub.s32 256, 256
      %15 = vsyncadd [#allocation3], %s14
      %s16 = sshll.u32 [#allocation2], 4
      %s17 = int_to_ptr.vmem [resolvable:$true] %s16
      %22 = dma.hbm_to_vmem [thread:$0]  %s0, 256, %s17, [#allocation3], 128, 128, 8
    $region5: #{tpu_custom_call.1} parent=1 // pred_fallthru
      _
    // Predicated region
    $region6: #{tpu_custom_call.1} parent=1 // pred_check
      _
    $region7: #{tpu_custom_call.1} parent=1 // pred_check_branch
      %24 = sbr.rel (0) target = $region9
    $region8: #{tpu_custom_call.1} parent=1 // pred_region
      %s26 = ssub.s32 16, 16
      %27 = vsyncadd [#allocation6], %s26
      %s29 = sshll.u32 [#allocation5], 4
      %s30 = int_to_ptr.vmem [resolvable:$true] %s29
      %32 = dma.hbm_to_vmem [thread:$0]  %s1, 16, %s30, [#allocation6]
    $region9: #{tpu_custom_call.1} parent=1 // pred_fallthru
      _
    // Predicated region
    $region10: #{tpu_custom_call.1} parent=1 // pred_check
      _
    $region11: #{tpu_custom_call.1} parent=1 // pred_check_branch
      %34 = sbr.rel (0) target = $region13
    $region12: #{tpu_custom_call.1} parent=1 // pred_region
      %s36 = ssub.s32 16, 16
      %37 = vsyncadd [#allocation6], %s36
      %s39 = sshll.u32 [#allocation7], 4
      %s40 = int_to_ptr.vmem [resolvable:$true] %s39
      %42 = dma.hbm_to_vmem [thread:$0]  %s2, 16, %s40, [#allocation6]
    $region13: #{tpu_custom_call.1} parent=1 // pred_fallthru
      _
    // Predicated region
    $region14: #{tpu_custom_call.1} parent=1 // pred_check
      _
    $region15: #{tpu_custom_call.1} parent=1 // pred_check_branch
      %44 = sbr.rel (0) target = $region17
    $region16: #{tpu_custom_call.1} parent=1 // pred_region
      %45 = dma.done [#allocation3], 256
    $region17: #{tpu_custom_call.1} parent=1 // pred_fallthru
      _
    // Predicated region
    $region18: #{tpu_custom_call.1} parent=1 // pred_check
      _
    $region19: #{tpu_custom_call.1} parent=1 // pred_check_branch
      %47 = sbr.rel (0) target = $region21
    $region20: #{tpu_custom_call.1} parent=1 // pred_region
      %48 = dma.done [#allocation6], 16
    $region21: #{tpu_custom_call.1} parent=1 // pred_fallthru
      _
    // Predicated region
    $region22: #{tpu_custom_call.1} parent=1 // pred_check
      _
    $region23: #{tpu_custom_call.1} parent=1 // pred_check_branch
      %50 = sbr.rel (0) target = $region25
    $region24: #{tpu_custom_call.1} parent=1 // pred_region
      %51 = dma.done [#allocation6], 16
    $region25: #{tpu_custom_call.1} parent=1 // pred_fallthru
      _
    %v52 = vld [vmem:[#allocation2] sm:$0xff]
    %v53 = vld [vmem:[#allocation2 + $0x8] sm:$0xff]
    %54 = vadd.xlane.f32.xlu0 %v52
    %v55 = vpop.xlane.xlu0 %54
    %56 = vadd.xlane.f32.xlu0 %v53
    %v57 = vpop.xlane.xlu0 %56
    %v58 = vrcp.pop 128.0
    %v59 = vmul.f32 %v55, %v58
    %v60 = vmul.f32 %v57, %v58
    %v61 = vsub.f32 %v52, %v59
    %v62 = vsub.f32 %v53, %v60
    %v63 = vmul.f32 %v61, %v61
    %v64 = vmul.f32 %v62, %v62
    %65 = vadd.xlane.f32.xlu0 %v63
    %v66 = vpop.xlane.xlu0 %65
    %67 = vadd.xlane.f32.xlu0 %v64
    %v68 = vpop.xlane.xlu0 %67
    %v69 = vmul.f32 %v66, 0.007874016
    %v70 = vmul.f32 %v68, 0.007874016
    %v71 = vrsqrt.pop %v69
    %v72 = vmul.f32 %v69, %v71
    %vm73 = vcmp.eq.f32.partialorder %v69, inf
    %v74 = vsel %vm73, %v69, %v72
    %vm75 = vcmp.eq.f32.partialorder %v69, 0.0
    %v76 = vand.u32 %v69, 2147483648
    %v77 = vsel %vm75, %v76, %v74
    %v78 = vrsqrt.pop %v70
    %v79 = vmul.f32 %v70, %v78
    %vm80 = vcmp.eq.f32.partialorder %v70, inf
    %v81 = vsel %vm80, %v70, %v79
    %vm82 = vcmp.eq.f32.partialorder %v70, 0.0
    %v83 = vand.u32 %v70, 2147483648
    %v84 = vsel %vm82, %v83, %v81
    %v85 = vadd.f32 %v77, 1e-06
    %v86 = vadd.f32 %v84, 1e-06
    %v87 = vrcp.pop %v85
    %v88 = vmul.f32 1.0, %v87
    %v89 = vrcp.pop %v86
    %v90 = vmul.f32 1.0, %v89
    %v91 = vld [vmem:[#allocation5] sm:$0x1]
    %v92 = vmul.f32 %v61, %v88
    %v93 = vmul.f32 %v62, %v90
    %v95 = vlaneseq
    %v96 = vshrl.u32 %v95, 7
    %v97 = vsub.s32 0, %v96
    %v98 = vrot.slane %v91, %v97
    %v100 = vmul.f32 %v98, %v92
    %v101 = vmul.f32 %v98, %v93
    %v102 = vld [vmem:[#allocation7] sm:$0x1]
    %v104 = vlaneseq
    %v105 = vshrl.u32 %v104, 7
    %v106 = vsub.s32 0, %v105
    %v107 = vrot.slane %v102, %v106
    %v109 = vadd.f32 %v100, %v107
    %v110 = vadd.f32 %v101, %v107
    %111 = vst [vmem:[#allocation8] sm:$0xff] %v109
    %112 = vst [vmem:[#allocation8 + $0x8] sm:$0xff] %v110
    // Predicated region
    $region26: #{tpu_custom_call.1} parent=1 // pred_check
      _
    $region27: #{tpu_custom_call.1} parent=1 // pred_check_branch
      %114 = sbr.rel (0) target = $region29
    $region28: #{tpu_custom_call.1} parent=1 // pred_region
      %s116 = ssub.s32 256, 256
      %117 = vsyncadd [#allocation4], %s116
      %s118 = sshll.u32 [#allocation8], 4
      %s119 = int_to_ptr.vmem [resolvable:$true] %s118
      %124 = dma.vmem_to_hbm [thread:$0]  %s119, 256, %s3, [#allocation4], 128, 128, 8
    $region29: #{tpu_custom_call.1} parent=1 // pred_fallthru
      _
    // Predicated region
    $region30: #{tpu_custom_call.1} parent=1 // pred_check
      _
    $region31: #{tpu_custom_call.1} parent=1 // pred_check_branch
      %126 = sbr.rel (0) target = $region33
    $region32: #{tpu_custom_call.1} parent=1 // pred_region
      %127 = dma.done [#allocation4], 256
    $region33: #{tpu_custom_call.1} parent=1 // pred_fallthru
      _
    %128 = vsyncpa [#allocation3], 1
    %129 = vsyncpa [#allocation6], 1
    %130 = vsyncpa [#allocation4], 1

</llo_original>
